<compile_context>
chip_gen: v7x
topology: tpu7x:2x2x1
jax: 0.10.0
libtpu: 0.0.40
codegen_flags: <defaults>
</compile_context>

<pallas_src>
import jax
import jax.numpy as jnp
from jax.experimental import pallas as pl
from jax.experimental.pallas import tpu as pltpu


def _round_up(n, m):
    return ((n + m - 1) // m) * m


def _policy_kernel(x_ref, w1_ref, b1_ref, w2_ref, b2_ref, out_ref):
    x = x_ref[...]                                                  # (TM, 22) f32
    # affine1 + tanh (f32 throughout; v5e-safe, MXU K=22 is negligible).
    h = jnp.tanh(
        jnp.dot(x, w1_ref[...], preferred_element_type=jnp.float32) + b1_ref[...]
    )                                                               # (TM, 20) f32
    # affine2 at the true output width (11 lanes).
    logits = (
        jnp.dot(h, w2_ref[...], preferred_element_type=jnp.float32) + b2_ref[...]
    )                                                               # (TM, 11) f32
    # Numerically stable softmax with exact normalization.
    m = jnp.max(logits, axis=-1, keepdims=True)
    e = jnp.exp(logits - m)
    denom = jnp.sum(e, axis=-1, keepdims=True)
    out_ref[...] = e / denom


def policy_forward(x, w1_t, b1, w2_t, b2, *, tm=1024):
    """x: (B, 22) f32; w1_t: (22, 20); b1: (1, 20); w2_t: (20, 11); b2: (1, 11)."""
    B, d_in = x.shape
    d_h = w1_t.shape[1]
    d_out = w2_t.shape[1]

    x = x.astype(jnp.float32)
    w1_t = w1_t.astype(jnp.float32)
    b1 = b1.astype(jnp.float32)
    w2_t = w2_t.astype(jnp.float32)
    b2 = b2.astype(jnp.float32)

    # Pad the batch only to the f32 sublane multiple (8); waste capped at 7 rows.
    b_pad = _round_up(B, 8)
    if b_pad != B:
        x = jnp.pad(x, ((0, b_pad - B), (0, 0)))

    # Tile selection: cap at `tm`, keep a multiple of 8, and when the whole
    # batch would otherwise be a single step, split it in two so both v7x
    # TensorCores get work (harmless on single-TC v5e/v6e).
    if 16 <= b_pad <= tm:
        tm = _round_up(pl.cdiv(b_pad, 2), 8)
    else:
        tm = min(tm, b_pad)
    grid = (pl.cdiv(b_pad, tm),)   # trailing partial block handled by Pallas

    out = pl.pallas_call(
        _policy_kernel,
        out_shape=jax.ShapeDtypeStruct((b_pad, d_out), jnp.float32),
        grid=grid,
        in_specs=[
            pl.BlockSpec((tm, d_in), lambda i: (i, 0)),      # x tile marches
            pl.BlockSpec((d_in, d_h), lambda i: (0, 0)),     # weights VMEM-resident
            pl.BlockSpec((1, d_h), lambda i: (0, 0)),
            pl.BlockSpec((d_h, d_out), lambda i: (0, 0)),
            pl.BlockSpec((1, d_out), lambda i: (0, 0)),
        ],
        out_specs=pl.BlockSpec((tm, d_out), lambda i: (i, 0)),
        compiler_params=pltpu.CompilerParams(
            dimension_semantics=("parallel",),               # v7x: shard across 2 TCs
        ),
    )(x, w1_t, b1, w2_t, b2)

    # No column slice needed (true 11-wide output); row slice only if we padded.
    return out if b_pad == B else out[:B]


def _init_params():
    """Deterministic parameter init mimicking nn.Linear's U(-1/sqrt(fan_in), ...)."""
    key = jax.random.PRNGKey(0)
    k1, k2, k3, k4 = jax.random.split(key, 4)
    bound1 = 1.0 / jnp.sqrt(22.0)
    bound2 = 1.0 / jnp.sqrt(20.0)
    # PyTorch stores Linear weight as (out, in); we keep (in, out) for the kernel.
    w1_t = jax.random.uniform(k1, (22, 20), jnp.float32, -bound1, bound1)
    b1 = jax.random.uniform(k2, (1, 20), jnp.float32, -bound1, bound1)
    w2_t = jax.random.uniform(k3, (20, 11), jnp.float32, -bound2, bound2)
    b2 = jax.random.uniform(k4, (1, 11), jnp.float32, -bound2, bound2)
    return w1_t, b1, w2_t, b2


if __name__ == "__main__":
    key = jax.random.PRNGKey(0)
    x = jax.random.normal(jax.random.fold_in(key, 123), (8, 22), jnp.float32)
    w1_t, b1, w2_t, b2 = _init_params()

    probs = policy_forward(x, w1_t, b1, w2_t, b2)
    probs = jax.block_until_ready(probs)

    # Pure-JAX f32 reference of the same forward pass.
    h_ref = jnp.tanh(x @ w1_t + b1)
    ref = jax.nn.softmax(h_ref @ w2_t + b2, axis=-1)

    assert probs.shape == (8, 11)
    assert jnp.allclose(probs, ref, atol=2e-2, rtol=2e-2)
    # Exact normalization -> row sums are 1 to f32 rounding.
    assert jnp.allclose(jnp.sum(probs, axis=-1), 1.0, atol=1e-3)

    print("KERNEL_OK")
</pallas_src>

<mosaic_0001>
module attributes {stable_mosaic.version = 11 : i64} {
  func.func @_policy_kernel(%arg0: i32, %arg1: memref<8x22xf32, #tpu.memory_space<vmem>>, %arg2: memref<22x20xf32, #tpu.memory_space<vmem>>, %arg3: memref<1x20xf32, #tpu.memory_space<vmem>>, %arg4: memref<20x11xf32, #tpu.memory_space<vmem>>, %arg5: memref<1x11xf32, #tpu.memory_space<vmem>>, %arg6: memref<8x11xf32, #tpu.memory_space<vmem>>) attributes {dimension_semantics = [#tpu.dimension_semantics<parallel>], iteration_bounds = array<i64: 1>, scalar_prefetch = 0 : i64, scratch_operands = 0 : i64, tpu.core_type = #tpu.core_type<tc>, window_params = [{transform_indices = @transform_0, window_bounds = array<i64: 8, 22>}, {pipeline_mode = #tpu.pipeline_mode<synchronous>, transform_indices = @transform_1, window_bounds = array<i64: 22, 20>}, {pipeline_mode = #tpu.pipeline_mode<synchronous>, transform_indices = @transform_2, window_bounds = array<i64: 1, 20>}, {pipeline_mode = #tpu.pipeline_mode<synchronous>, transform_indices = @transform_3, window_bounds = array<i64: 20, 11>}, {pipeline_mode = #tpu.pipeline_mode<synchronous>, transform_indices = @transform_4, window_bounds = array<i64: 1, 11>}, {transform_indices = @transform_5, window_bounds = array<i64: 8, 11>}]} {
    %c0 = arith.constant 0 : index
    %c0_0 = arith.constant 0 : index
    %0 = vector.load %arg1[%c0, %c0_0] : memref<8x22xf32, #tpu.memory_space<vmem>>, vector<8x22xf32>
    %c0_1 = arith.constant 0 : index
    %c0_2 = arith.constant 0 : index
    %1 = vector.load %arg2[%c0_1, %c0_2] : memref<22x20xf32, #tpu.memory_space<vmem>>, vector<22x20xf32>
    %cst = arith.constant dense<0.000000e+00> : vector<8x20xf32>
    %2 = tpu.matmul %0, %1, %cst {dimension_numbers = #tpu.dot_dimension_numbers<[1], [0], [0], [1], [0, 0, 1, 1], [], []>} : vector<8x22xf32>, vector<22x20xf32>, vector<8x20xf32> -> vector<8x20xf32>
    %c0_3 = arith.constant 0 : index
    %c0_4 = arith.constant 0 : index
    %3 = vector.load %arg3[%c0_3, %c0_4] : memref<1x20xf32, #tpu.memory_space<vmem>>, vector<1x20xf32>
    %4 = vector.broadcast %3 : vector<1x20xf32> to vector<8x20xf32>
    %5 = arith.addf %2, %4 : vector<8x20xf32>
    %6 = math.tanh %5 : vector<8x20xf32>
    %c0_5 = arith.constant 0 : index
    %c0_6 = arith.constant 0 : index
    %7 = vector.load %arg4[%c0_5, %c0_6] : memref<20x11xf32, #tpu.memory_space<vmem>>, vector<20x11xf32>
    %cst_7 = arith.constant dense<0.000000e+00> : vector<8x11xf32>
    %8 = tpu.matmul %6, %7, %cst_7 {dimension_numbers = #tpu.dot_dimension_numbers<[1], [0], [0], [1], [0, 0, 1, 1], [], []>} : vector<8x20xf32>, vector<20x11xf32>, vector<8x11xf32> -> vector<8x11xf32>
    %c0_8 = arith.constant 0 : index
    %c0_9 = arith.constant 0 : index
    %9 = vector.load %arg5[%c0_8, %c0_9] : memref<1x11xf32, #tpu.memory_space<vmem>>, vector<1x11xf32>
    %10 = vector.broadcast %9 : vector<1x11xf32> to vector<8x11xf32>
    %11 = arith.addf %8, %10 : vector<8x11xf32>
    %cst_10 = arith.constant dense<0xFF800000> : vector<8xf32>
    %12 = vector.multi_reduction <maximumf>, %11, %cst_10 [1] : vector<8x11xf32> to vector<8xf32>
    %13 = vector.shape_cast %12 : vector<8xf32> to vector<8x1xf32>
    %14 = vector.broadcast %13 : vector<8x1xf32> to vector<8x11xf32>
    %15 = arith.subf %11, %14 : vector<8x11xf32>
    %16 = math.exp %15 : vector<8x11xf32>
    %cst_11 = arith.constant dense<0.000000e+00> : vector<8xf32>
    %17 = vector.multi_reduction <add>, %16, %cst_11 [1] : vector<8x11xf32> to vector<8xf32>
    %18 = vector.shape_cast %17 : vector<8xf32> to vector<8x1xf32>
    %19 = vector.broadcast %18 : vector<8x1xf32> to vector<8x11xf32>
    %20 = arith.divf %16, %19 : vector<8x11xf32>
    %c0_12 = arith.constant 0 : index
    %c0_13 = arith.constant 0 : index
    %21 = vector.load %arg6[%c0_12, %c0_13] : memref<8x11xf32, #tpu.memory_space<vmem>>, vector<8x11xf32>
    tpu.vector_store %arg6[%c0_12, %c0_13], %20 {strides = array<i32>} : memref<8x11xf32, #tpu.memory_space<vmem>>, vector<8x11xf32>,
    return
  }
  func.func @transform_0(%arg0: i32) -> (i32, i32) {
    %c0_i32 = arith.constant 0 : i32
    %c0_i32_0 = arith.constant 0 : i32
    return %arg0, %c0_i32 : i32, i32
  }
  func.func @transform_1(%arg0: i32) -> (i32, i32) {
    %c0_i32 = arith.constant 0 : i32
    %c0_i32_0 = arith.constant 0 : i32
    %c0_i32_1 = arith.constant 0 : i32
    return %c0_i32, %c0_i32_0 : i32, i32
  }
  func.func @transform_2(%arg0: i32) -> (i32, i32) {
    %c0_i32 = arith.constant 0 : i32
    %c0_i32_0 = arith.constant 0 : i32
    %c0_i32_1 = arith.constant 0 : i32
    return %c0_i32, %c0_i32_0 : i32, i32
  }
  func.func @transform_3(%arg0: i32) -> (i32, i32) {
    %c0_i32 = arith.constant 0 : i32
    %c0_i32_0 = arith.constant 0 : i32
    %c0_i32_1 = arith.constant 0 : i32
    return %c0_i32, %c0_i32_0 : i32, i32
  }
  func.func @transform_4(%arg0: i32) -> (i32, i32) {
    %c0_i32 = arith.constant 0 : i32
    %c0_i32_0 = arith.constant 0 : i32
    %c0_i32_1 = arith.constant 0 : i32
    return %c0_i32, %c0_i32_0 : i32, i32
  }
  func.func @transform_5(%arg0: i32) -> (i32, i32) {
    %c0_i32 = arith.constant 0 : i32
    %c0_i32_0 = arith.constant 0 : i32
    return %arg0, %c0_i32 : i32, i32
  }
}

</mosaic_0001>

<llo_original>
// kernel: tpu_custom_call.1
$region0: #{tpu_custom_call.1}
  #allocation0 [shape = 'u32[]', space=smem, size = 0x4, offset = 0x4, fixed_abs, tag = 'smem constant byte address 0x4 - core index']
  #allocation1 [shape = 'u32[144,128]{1,0:T(1,128)}', space=vmem, size = 0x12000, scoped, tag = 'internal scratch']
  %s0 = inlined_call_operand.vmem [shape: f32[8,22], index: 0, kind: input, shape index: {}]
  %s1 = inlined_call_operand.vmem [shape: f32[22,20], index: 1, kind: input, shape index: {}]
  %s2 = inlined_call_operand.vmem [shape: f32[1,20], index: 2, kind: input, shape index: {}]
  %s3 = inlined_call_operand.vmem [shape: f32[20,11], index: 3, kind: input, shape index: {}]
  %s4 = inlined_call_operand.vmem [shape: f32[1,11], index: 4, kind: input, shape index: {}]
  %s5 = inlined_call_operand.hbm [shape: f32[8,11], index: 5, kind: output, shape index: {}]
  %s6 = sld [smem:[#allocation0]]
  $region30: #{tpu_custom_call.1} parent=0
    _
  %s8 = ssub.s32 1, %s6
  %s9 = scalar_select 0, %s8, %s6
  $region1: #{tpu_custom_call.1} parent=0
    #allocation2 [shape = 'u8[4096]{0}', space=vmem, size = 0x1000, scoped, tag = 'output window, operand 0, single buffered']
    #allocation3 [shape = 's32[1]{0}', space=sflag, size = 0x4, scoped, tag = 'scoped memory for tpu_custom_call.1']
    %10 = vsyncpa [#allocation3], 0
    // Predicated region
    $region2: #{tpu_custom_call.1} parent=1 // pred_check
      _
    $region3: #{tpu_custom_call.1} parent=1 // pred_check_branch
      %12 = sbr.rel (0) target = $region5
    $region4: #{tpu_custom_call.1} parent=1 // pred_region
      _
    $region5: #{tpu_custom_call.1} parent=1 // pred_fallthru
      _
    // Predicated region
    $region6: #{tpu_custom_call.1} parent=1 // pred_check
      _
    $region7: #{tpu_custom_call.1} parent=1 // pred_check_branch
      %14 = sbr.rel (0) target = $region9
    $region8: #{tpu_custom_call.1} parent=1 // pred_region
      _
    $region9: #{tpu_custom_call.1} parent=1 // pred_fallthru
      _
    // Predicated region
    $region10: #{tpu_custom_call.1} parent=1 // pred_check
      _
    $region11: #{tpu_custom_call.1} parent=1 // pred_check_branch
      %16 = sbr.rel (0) target = $region13
    $region12: #{tpu_custom_call.1} parent=1 // pred_region
      _
    $region13: #{tpu_custom_call.1} parent=1 // pred_fallthru
      _
    // Predicated region
    $region14: #{tpu_custom_call.1} parent=1 // pred_check
      _
    $region15: #{tpu_custom_call.1} parent=1 // pred_check_branch
      %18 = sbr.rel (0) target = $region17
    $region16: #{tpu_custom_call.1} parent=1 // pred_region
      _
    $region17: #{tpu_custom_call.1} parent=1 // pred_fallthru
      _
    // Predicated region
    $region18: #{tpu_custom_call.1} parent=1 // pred_check
      _
    $region19: #{tpu_custom_call.1} parent=1 // pred_check_branch
      %20 = sbr.rel (0) target = $region21
    $region20: #{tpu_custom_call.1} parent=1 // pred_region
      _
    $region21: #{tpu_custom_call.1} parent=1 // pred_fallthru
      _
    %v21 = vld [vmem:[%s0] sm:$0xff]
    %v22 = vld [vmem:[%s1] sm:$0xff]
    %v23 = vld [vmem:[%s1 + $0x8] sm:$0xff]
    %v24 = vld [vmem:[%s1 + $0x10] sm:$0x3f]
    %v25 = vld [vmem:[%s2] sm:$0x1]
    %v27 = vlaneseq
    %v28 = vshrl.u32 %v27, 7
    %v29 = vsub.s32 0, %v28
    %v30 = vrot.slane %v25, %v29
    %vm32 = vcmask 179200
    %v34 = vsel %vm32, %v21, 0
    %vm36 = vcmask 1045504
    %v38 = vsel %vm36, %v24, 0
    %40 = vmatprep.subr.mxu0 0.0
    %41 = vmatpush1.msra.mxu0 %v22
    %42 = vmatprep.subr.mxu0 0.0
    %43 = vmatpush1.msra.mxu0 %v23
    %44 = vmatprep.subr.mxu0 0.0
    %45 = vmatpush1.msra.mxu0 %v38
    %46 = vmatprep.subr.mxu0 0.0
    %47 = vmatpush1.msra.mxu0 0.0
    %48 = vmatprep.subr.mxu0 0.0
    %49 = vmatpush1.msra.mxu0 0.0
    %50 = vmatprep.subr.mxu0 0.0
    %51 = vmatpush1.msra.mxu0 0.0
    %52 = vmatprep.subr.mxu0 0.0
    %53 = vmatpush1.msra.mxu0 0.0
    %54 = vmatprep.subr.mxu0 0.0
    %55 = vmatpush1.msra.mxu0 0.0
    %56 = vmatprep.subr.mxu0 0.0
    %57 = vmatpush1.msra.mxu0 0.0
    %58 = vmatprep.subr.mxu0 0.0
    %59 = vmatpush1.msra.mxu0 0.0
    %60 = vmatprep.subr.mxu0 0.0
    %61 = vmatpush1.msra.mxu0 0.0
    %62 = vmatprep.subr.mxu0 0.0
    %63 = vmatpush1.msra.mxu0 0.0
    %64 = vmatprep.subr.mxu0 0.0
    %65 = vmatpush1.msra.mxu0 0.0
    %66 = vmatprep.subr.mxu0 0.0
    %67 = vmatpush1.msra.mxu0 0.0
    %68 = vmatprep.subr.mxu0 0.0
    %69 = vmatpush1.msra.mxu0 0.0
    %70 = vmatprep.subr.mxu0 0.0
    %71 = vmatpush1.msra.mxu0 0.0
    %72 = vmatprep.subr.mxu0 0.0
    %73 = vmatpush1.msra.mxu0 0.0
    %74 = vmatprep.subr.mxu0 0.0
    %75 = vmatpush1.msra.mxu0 0.0
    %76 = vmatprep.subr.mxu0 0.0
    %77 = vmatpush1.msra.mxu0 0.0
    %78 = vmatprep.subr.mxu0 0.0
    %79 = vmatpush1.msra.mxu0 0.0
    %80 = vmatprep.subr.mxu0 0.0
    %81 = vmatpush1.msra.mxu0 0.0
    %82 = vmatprep.subr.mxu0 0.0
    %83 = vmatpush1.msra.mxu0 0.0
    %84 = vmatprep.subr.mxu0 0.0
    %85 = vmatpush1.msra.mxu0 0.0
    %86 = vmatprep.subr.mxu0 0.0
    %87 = vmatpush1.msra.mxu0 0.0
    %88 = vmatprep.subr.mxu0 0.0
    %89 = vmatpush1.msra.mxu0 0.0
    %90 = vmatprep.subr.mxu0 0.0
    %91 = vmatpush1.msra.mxu0 0.0
    %92 = vmatprep.subr.mxu0 0.0
    %93 = vmatpush1.msra.mxu0 0.0
    %94 = vmatprep.subr.mxu0 0.0
    %95 = vmatpush1.msra.mxu0 0.0
    %96 = vmatprep.subr.mxu0 0.0
    %97 = vmatpush1.msra.mxu0 0.0
    %98 = vmatprep.subr.mxu0 0.0
    %99 = vmatpush1.msra.mxu0 0.0
    %100 = vmatprep.subr.mxu0 0.0
    %101 = vmatpush1.msra.mxu0 0.0
    %102 = vmatprep.subr.mxu0 0.0
    %103 = vmatpush1.msra.mxu0 0.0
    %104 = vmatprep.mubr.f32.mxu0 0.0
    %105 = vmatmul.mubr.f32.gmra.mrb[0].mxu0 %v34
    %v106 = vpop.f32.mrb[0].mxu0
    %v107 = vadd.f32 %v30, %v106
    %v108 = vpop.f32.mrb[0].mxu0
    %109 = vdwg.mxu0
    %v110 = vtanh.pop %v107
    %v111 = vld [vmem:[%s3] sm:$0xff]
    %v112 = vld [vmem:[%s3 + $0x8] sm:$0xff]
    %v113 = vld [vmem:[%s3 + $0x10] sm:$0xf]
    %v114 = vld [vmem:[%s4] sm:$0x1]
    %v116 = vlaneseq
    %v117 = vshrl.u32 %v116, 7
    %v118 = vsub.s32 0, %v117
    %v119 = vrot.slane %v114, %v118
    %vm121 = vcmask 162816
    %v123 = vsel %vm121, %v110, 0
    %vm125 = vcmask 1043456
    %v127 = vsel %vm125, %v113, 0
    %129 = vmatprep.subr.mxu0 0.0
    %130 = vmatpush1.msra.mxu0 %v111
    %131 = vmatprep.subr.mxu0 0.0
    %132 = vmatpush1.msra.mxu0 %v112
    %133 = vmatprep.subr.mxu0 0.0
    %134 = vmatpush1.msra.mxu0 %v127
    %135 = vmatprep.subr.mxu0 0.0
    %136 = vmatpush1.msra.mxu0 0.0
    %137 = vmatprep.subr.mxu0 0.0
    %138 = vmatpush1.msra.mxu0 0.0
    %139 = vmatprep.subr.mxu0 0.0
    %140 = vmatpush1.msra.mxu0 0.0
    %141 = vmatprep.subr.mxu0 0.0
    %142 = vmatpush1.msra.mxu0 0.0
    %143 = vmatprep.subr.mxu0 0.0
    %144 = vmatpush1.msra.mxu0 0.0
    %145 = vmatprep.subr.mxu0 0.0
    %146 = vmatpush1.msra.mxu0 0.0
    %147 = vmatprep.subr.mxu0 0.0
    %148 = vmatpush1.msra.mxu0 0.0
    %149 = vmatprep.subr.mxu0 0.0
    %150 = vmatpush1.msra.mxu0 0.0
    %151 = vmatprep.subr.mxu0 0.0
    %152 = vmatpush1.msra.mxu0 0.0
    %153 = vmatprep.subr.mxu0 0.0
    %154 = vmatpush1.msra.mxu0 0.0
    %155 = vmatprep.subr.mxu0 0.0
    %156 = vmatpush1.msra.mxu0 0.0
    %157 = vmatprep.subr.mxu0 0.0
    %158 = vmatpush1.msra.mxu0 0.0
    %159 = vmatprep.subr.mxu0 0.0
    %160 = vmatpush1.msra.mxu0 0.0
    %161 = vmatprep.subr.mxu0 0.0
    %162 = vmatpush1.msra.mxu0 0.0
    %163 = vmatprep.subr.mxu0 0.0
    %164 = vmatpush1.msra.mxu0 0.0
    %165 = vmatprep.subr.mxu0 0.0
    %166 = vmatpush1.msra.mxu0 0.0
    %167 = vmatprep.subr.mxu0 0.0
    %168 = vmatpush1.msra.mxu0 0.0
    %169 = vmatprep.subr.mxu0 0.0
    %170 = vmatpush1.msra.mxu0 0.0
    %171 = vmatprep.subr.mxu0 0.0
    %172 = vmatpush1.msra.mxu0 0.0
    %173 = vmatprep.subr.mxu0 0.0
    %174 = vmatpush1.msra.mxu0 0.0
    %175 = vmatprep.subr.mxu0 0.0
    %176 = vmatpush1.msra.mxu0 0.0
    %177 = vmatprep.subr.mxu0 0.0
    %178 = vmatpush1.msra.mxu0 0.0
    %179 = vmatprep.subr.mxu0 0.0
    %180 = vmatpush1.msra.mxu0 0.0
    %181 = vmatprep.subr.mxu0 0.0
    %182 = vmatpush1.msra.mxu0 0.0
    %183 = vmatprep.subr.mxu0 0.0
    %184 = vmatpush1.msra.mxu0 0.0
    %185 = vmatprep.subr.mxu0 0.0
    %186 = vmatpush1.msra.mxu0 0.0
    %187 = vmatprep.subr.mxu0 0.0
    %188 = vmatpush1.msra.mxu0 0.0
    %189 = vmatprep.subr.mxu0 0.0
    %190 = vmatpush1.msra.mxu0 0.0
    %191 = vmatprep.subr.mxu0 0.0
    %192 = vmatpush1.msra.mxu0 0.0
    %193 = vmatprep.mubr.f32.mxu0 0.0
    %194 = vmatmul.mubr.f32.gmra.mrb[0].mxu0 %v123
    %v195 = vpop.f32.mrb[0].mxu0
    %v196 = vadd.f32 %v119, %v195
    %v197 = vpop.f32.mrb[0].mxu0
    %198 = vdwg.mxu0
    %vm199 = vcmask 89088
    %v200 = vsel %vm199, %v196, -inf
    %201 = vmax.xlane.f32.xlu0 %v200
    %v202 = vpop.xlane.xlu0 %201
    %v203 = vsub.f32 %v196, %v202
    %v204 = vmul.f32 %v203, 1.442695
    %v205 = vpow.pop %v204
    %v206 = vsel %vm199, %v205, 0.0
    %207 = vadd.xlane.f32.xlu0 %v206
    %v208 = vpop.xlane.xlu0 %207
    %v209 = vrcp.pop %v208
    %v210 = vmul.f32 %v205, %v209
    %211 = vst.msk [vmem:[#allocation2] sm:$0xff] %vm199, %v210
    // Predicated region
    $region22: #{tpu_custom_call.1} parent=1 // pred_check
      _
    $region23: #{tpu_custom_call.1} parent=1 // pred_check_branch
      %213 = sbr.rel (0) target = $region25
    $region24: #{tpu_custom_call.1} parent=1 // pred_region
      %s215 = ssub.s32 128, 128
      %216 = vsyncadd [#allocation3], %s215
      %s218 = sshll.u32 [#allocation2], 4
      %s219 = int_to_ptr.vmem [resolvable:$true] %s218
      %221 = dma.vmem_to_hbm [thread:$0]  %s219, 128, %s5, [#allocation3]
    $region25: #{tpu_custom_call.1} parent=1 // pred_fallthru
      _
    // Predicated region
    $region26: #{tpu_custom_call.1} parent=1 // pred_check
      _
    $region27: #{tpu_custom_call.1} parent=1 // pred_check_branch
      %223 = sbr.rel (0) target = $region29
    $region28: #{tpu_custom_call.1} parent=1 // pred_region
      %224 = dma.done [#allocation3], 128
    $region29: #{tpu_custom_call.1} parent=1 // pred_fallthru
      _
    %225 = vsyncpa [#allocation3], 1

</llo_original>
